<compile_context>
chip_gen: v7x
topology: tpu7x:2x2x1
jax: 0.10.0
libtpu: 0.0.40
codegen_flags: <defaults>
</compile_context>

<pallas_src>
import functools

import jax
import jax.numpy as jnp
from jax.experimental import pallas as pl
from jax.experimental.pallas import tpu as pltpu


def _vmem_capacity_bytes():
    """Best-effort query of per-core VMEM capacity; conservative fallback."""
    try:
        info = pltpu.get_tpu_info()
        cap = getattr(info, "vmem_capacity_bytes", None)
        if cap:
            return int(cap)
    except Exception:
        pass
    return 64 * 1024 * 1024  # v7x-sized fallback (safe everywhere)


def _round_up(x, m):
    return ((x + m - 1) // m) * m


def _choose_block_n(n, c, itemsize, vmem_budget):
    """Largest row tile (multiple of the sublane packing) within the budget."""
    mult = max(8, 32 // itemsize)           # 8 f32 / 16 bf16 / 32 int8-fp8
    # Per-row VMEM bytes: 2x double-buffered logp tile + 2x double-buffered
    # int32 targets (lane-padded to 128 lanes -> 512 B each) + (block_n, 1)
    # f32 accumulator (lane-padded -> 512 B).
    per_row = c * 2 * itemsize + 2 * 512 + 512
    block_n = vmem_budget // max(per_row, 1)
    block_n = min(block_n, _round_up(n, mult))   # no point exceeding N
    block_n = max(mult, (block_n // mult) * mult)
    return int(block_n)


def _kldiv_kernel(logp_ref, tgt_ref, out_ref, acc_ref, *, pad_idx, n, block_n):
    """One (block_n, C) tile of log-probs + (block_n, 1) targets.

    Per step: masked select of -log_prob, lane-reduce into a (block_n, 1) f32
    accumulator.  Final step: full reduce of the tiny accumulator + store.
    """
    i = pl.program_id(0)

    @pl.when(i == 0)
    def _():
        acc_ref[...] = jnp.zeros_like(acc_ref)

    logp = logp_ref[...]                      # (TN, C) in input dtype
    tgt = tgt_ref[...]                        # (TN, 1) int32
    tn, c = logp.shape

    # Global row ids mask the padded tail of the final partial block.
    row_ids = i * block_n + jax.lax.broadcasted_iota(jnp.int32, (tn, 1), 0)
    valid = row_ids < n
    if pad_idx is not None:
        valid = jnp.logical_and(valid, tgt != jnp.int32(pad_idx))

    col_ids = jax.lax.broadcasted_iota(jnp.int32, (tn, c), 1)
    mask = jnp.logical_and(col_ids == tgt, valid)            # (TN, C)

    # one_hot * (log(one_hot) - logp) == -logp where one_hot, else 0.
    # Keep the select form: masked-out lanes may hold garbage / -inf.
    contrib = jnp.where(mask, -logp.astype(jnp.float32), 0.0)
    acc_ref[...] += jnp.sum(contrib, axis=-1, keepdims=True)  # XLU lane reduce

    @pl.when(i == pl.num_programs(0) - 1)
    def _():
        total = jnp.sum(acc_ref[...])
        out_ref[...] = jnp.full(out_ref.shape, total, dtype=out_ref.dtype)


def kldiv_loss_pallas(log_probabilities, targets, *, pad_idx=None,
                      reduction="mean", block_n=None):
    """Pallas implementation of Kldiv_Loss.forward.

    Args:
      log_probabilities: (N, C) float32/bfloat16 log-probabilities.
      targets: (N,) integer class indices.
    Returns:
      scalar float32 loss.
    """
    n, c = log_probabilities.shape
    itemsize = jnp.dtype(log_probabilities.dtype).itemsize

    vmem_cap = _vmem_capacity_bytes()
    vmem_budget = vmem_cap // 4              # ~32 MiB v5e/v6e, ~16 MiB v7x
    vmem_limit = vmem_cap // 2               # scoped limit with headroom

    if block_n is None:
        block_n = _choose_block_n(n, c, itemsize, vmem_budget)

    tgt_2d = targets.astype(jnp.int32).reshape(n, 1)
    num_blocks = pl.cdiv(n, block_n)

    kernel = functools.partial(_kldiv_kernel, pad_idx=pad_idx, n=n,
                               block_n=block_n)

    partial = pl.pallas_call(
        kernel,
        out_shape=jax.ShapeDtypeStruct((8, 128), jnp.float32),
        grid_spec=pltpu.PrefetchScalarGridSpec(
            num_scalar_prefetch=0,
            grid=(num_blocks,),
            in_specs=[
                pl.BlockSpec((block_n, c), lambda i: (i, 0)),
                pl.BlockSpec((block_n, 1), lambda i: (i, 0)),
            ],
            out_specs=pl.BlockSpec((8, 128), lambda i: (0, 0)),
            scratch_shapes=[pltpu.VMEM((block_n, 1), jnp.float32)],
        ),
        compiler_params=pltpu.CompilerParams(
            dimension_semantics=("arbitrary",),
            vmem_limit_bytes=int(vmem_limit),
        ),
    )(log_probabilities, tgt_2d)

    total = partial[0, 0]
    if reduction == "mean":
        return total / jnp.float32(n * c)
    elif reduction == "batchmean":
        return total / jnp.float32(n)
    elif reduction == "sum":
        return total
    else:
        raise ValueError(f"unsupported reduction: {reduction}")


def _reference(log_probabilities, targets, pad_idx=None, reduction="mean"):
    """Plain-JAX reference for checking the kernel."""
    n, c = log_probabilities.shape
    one_hot = jax.nn.one_hot(targets, c, dtype=jnp.float32)
    if pad_idx is not None:
        one_hot = one_hot * (targets != pad_idx)[:, None].astype(jnp.float32)
    pointwise = jnp.where(one_hot > 0,
                          -log_probabilities.astype(jnp.float32), 0.0)
    total = jnp.sum(pointwise)
    if reduction == "mean":
        return total / (n * c)
    elif reduction == "batchmean":
        return total / n
    return total


if __name__ == "__main__":
    key = jax.random.PRNGKey(0)
    k_logits, k_tgt = jax.random.split(key)

    # Config 1: small (N, C) f32 with pad_idx, 'mean' reduction.
    N, C = 16, 32
    raw = jax.random.normal(k_logits, (N, C), dtype=jnp.float32)
    log_probs = jax.nn.log_softmax(raw, axis=-1)   # module expects log-probs
    targets = jax.random.randint(k_tgt, (N,), 0, C, dtype=jnp.int32)

    loss = kldiv_loss_pallas(log_probs, targets, pad_idx=0, reduction="mean")
    loss = jax.block_until_ready(loss)
    ref = _reference(log_probs, targets, pad_idx=0, reduction="mean")
    assert jnp.allclose(loss, ref, atol=1e-5, rtol=1e-5), (loss, ref)

    # Config 2: N not a multiple of the tile, forced small tile ->
    # exercises the cdiv grid and the masked partial edge block.
    N2, C2 = 19, 128
    raw2 = jax.random.normal(k_logits, (N2, C2), dtype=jnp.float32)
    log_probs2 = jax.nn.log_softmax(raw2, axis=-1)
    targets2 = jax.random.randint(k_tgt, (N2,), 0, C2, dtype=jnp.int32)
    loss2 = kldiv_loss_pallas(log_probs2, targets2, pad_idx=None,
                              reduction="batchmean", block_n=8)
    loss2 = jax.block_until_ready(loss2)
    ref2 = _reference(log_probs2, targets2, pad_idx=None,
                      reduction="batchmean")
    assert jnp.allclose(loss2, ref2, atol=1e-5, rtol=1e-5), (loss2, ref2)

    # Config 3: bf16 inputs (no wrapper upcast; per-tile cast in-kernel),
    # 'sum' reduction, pad_idx set.
    N3, C3 = 64, 256
    raw3 = jax.random.normal(k_logits, (N3, C3), dtype=jnp.float32)
    log_probs3 = jax.nn.log_softmax(raw3, axis=-1).astype(jnp.bfloat16)
    targets3 = jax.random.randint(k_tgt, (N3,), 0, C3, dtype=jnp.int32)
    loss3 = kldiv_loss_pallas(log_probs3, targets3, pad_idx=3, reduction="sum")
    loss3 = jax.block_until_ready(loss3)
    ref3 = _reference(log_probs3, targets3, pad_idx=3, reduction="sum")
    assert jnp.allclose(loss3, ref3, atol=1e-2, rtol=1e-3), (loss3, ref3)

    print("KERNEL_OK")
</pallas_src>

<mosaic_0001>
module attributes {stable_mosaic.version = 11 : i64} {
  func.func @_kldiv_kernel(%arg0: i32, %arg1: memref<16x32xf32, #tpu.memory_space<vmem>>, %arg2: memref<16x1xi32, #tpu.memory_space<vmem>>, %arg3: memref<8x128xf32, #tpu.memory_space<vmem>>, %arg4: memref<16x1xf32, #tpu.memory_space<vmem>>) attributes {dimension_semantics = [#tpu.dimension_semantics<arbitrary>], iteration_bounds = array<i64: 1>, scalar_prefetch = 0 : i64, scratch_operands = 1 : i64, tpu.core_type = #tpu.core_type<tc>, window_params = [{transform_indices = @transform_0, window_bounds = array<i64: 16, 32>}, {transform_indices = @transform_1, window_bounds = array<i64: 16, 1>}, {pipeline_mode = #tpu.pipeline_mode<synchronous>, transform_indices = @transform_2, window_bounds = array<i64: 8, 128>}]} {
    %c0_i32 = arith.constant 0 : i32
    %0 = arith.cmpi eq, %arg0, %c0_i32 : i32
    %1 = arith.extui %0 : i1 to i32
    %c0_i32_0 = arith.constant 0 : i32
    %2 = arith.cmpi ne, %1, %c0_i32_0 : i32
    scf.if %2 {
      %cst_14 = arith.constant 0.000000e+00 : f32
      %31 = vector.broadcast %cst_14 : f32 to vector<16x1xf32>
      %c0_15 = arith.constant 0 : index
      %c0_16 = arith.constant 0 : index
      %32 = vector.load %arg4[%c0_15, %c0_16] : memref<16x1xf32, #tpu.memory_space<vmem>>, vector<16x1xf32>
      tpu.vector_store %arg4[%c0_15, %c0_16], %31 {strides = array<i32>} : memref<16x1xf32, #tpu.memory_space<vmem>>, vector<16x1xf32>,
    } else {
    }
    %c0 = arith.constant 0 : index
    %c0_1 = arith.constant 0 : index
    %3 = vector.load %arg1[%c0, %c0_1] : memref<16x32xf32, #tpu.memory_space<vmem>>, vector<16x32xf32>
    %c0_2 = arith.constant 0 : index
    %c0_3 = arith.constant 0 : index
    %4 = vector.load %arg2[%c0_2, %c0_3] : memref<16x1xi32, #tpu.memory_space<vmem>>, vector<16x1xi32>
    %c16_i32 = arith.constant 16 : i32
    %5 = arith.muli %arg0, %c16_i32 : i32
    %6 = tpu.iota {dimensions = array<i32: 0>} : vector<16x1xi32>
    %7 = vector.broadcast %5 : i32 to vector<16x1xi32>
    %8 = arith.addi %7, %6 : vector<16x1xi32>
    %c16_i32_4 = arith.constant 16 : i32
    %9 = vector.broadcast %c16_i32_4 : i32 to vector<16x1xi32>
    %10 = arith.cmpi slt, %8, %9 : vector<16x1xi32>
    %c0_i32_5 = arith.constant 0 : i32
    %11 = vector.broadcast %c0_i32_5 : i32 to vector<16x1xi32>
    %12 = arith.cmpi ne, %4, %11 : vector<16x1xi32>
    %13 = arith.andi %10, %12 : vector<16x1xi1>
    %14 = tpu.iota {dimensions = array<i32: 1>} : vector<16x32xi32>
    %15 = vector.broadcast %4 : vector<16x1xi32> to vector<16x32xi32>
    %16 = arith.cmpi eq, %14, %15 : vector<16x32xi32>
    %17 = vector.broadcast %13 : vector<16x1xi1> to vector<16x32xi1>
    %18 = arith.andi %16, %17 : vector<16x32xi1>
    %cst = arith.constant 0.000000e+00 : f32
    %19 = vector.broadcast %cst : f32 to vector<16x32xf32>
    %20 = arith.subf %19, %3 : vector<16x32xf32>
    %cst_6 = arith.constant 0.000000e+00 : f32
    %21 = vector.broadcast %cst_6 : f32 to vector<16x32xf32>
    %22 = arith.select %18, %20, %21 : vector<16x32xi1>, vector<16x32xf32>
    %c0_7 = arith.constant 0 : index
    %c0_8 = arith.constant 0 : index
    %23 = vector.load %arg4[%c0_7, %c0_8] : memref<16x1xf32, #tpu.memory_space<vmem>>, vector<16x1xf32>
    %cst_9 = arith.constant dense<0.000000e+00> : vector<16xf32>
    %24 = vector.multi_reduction <add>, %22, %cst_9 [1] : vector<16x32xf32> to vector<16xf32>
    %25 = vector.shape_cast %24 : vector<16xf32> to vector<16x1xf32>
    %26 = arith.addf %23, %25 : vector<16x1xf32>
    %c0_10 = arith.constant 0 : index
    %c0_11 = arith.constant 0 : index
    %27 = vector.load %arg4[%c0_10, %c0_11] : memref<16x1xf32, #tpu.memory_space<vmem>>, vector<16x1xf32>
    tpu.vector_store %arg4[%c0_10, %c0_11], %26 {strides = array<i32>} : memref<16x1xf32, #tpu.memory_space<vmem>>, vector<16x1xf32>,
    %c0_i32_12 = arith.constant 0 : i32
    %28 = arith.cmpi eq, %arg0, %c0_i32_12 : i32
    %29 = arith.extui %28 : i1 to i32
    %c0_i32_13 = arith.constant 0 : i32
    %30 = arith.cmpi ne, %29, %c0_i32_13 : i32
    scf.if %30 {
      %c0_14 = arith.constant 0 : index
      %c0_15 = arith.constant 0 : index
      %31 = vector.load %arg4[%c0_14, %c0_15] : memref<16x1xf32, #tpu.memory_space<vmem>>, vector<16x1xf32>
      %32 = vector.shape_cast %31 : vector<16x1xf32> to vector<1x16x1xf32>
      %cst_16 = arith.constant dense<0.000000e+00> : vector<1xf32>
      %33 = vector.multi_reduction <add>, %32, %cst_16 [1, 2] : vector<1x16x1xf32> to vector<1xf32>
      %34 = vector.shape_cast %33 : vector<1xf32> to vector<1x1x1xf32>
      %35 = vector.extract %34[0, 0, 0] : f32 from vector<1x1x1xf32>
      %36 = vector.broadcast %35 : f32 to vector<8x128xf32>
      %c0_17 = arith.constant 0 : index
      %c0_18 = arith.constant 0 : index
      %37 = vector.load %arg3[%c0_17, %c0_18] : memref<8x128xf32, #tpu.memory_space<vmem>>, vector<8x128xf32>
      tpu.vector_store %arg3[%c0_17, %c0_18], %36 {strides = array<i32>} : memref<8x128xf32, #tpu.memory_space<vmem>>, vector<8x128xf32>,
    } else {
    }
    return
  }
  func.func @transform_0(%arg0: i32) -> (i32, i32) {
    %c0_i32 = arith.constant 0 : i32
    %c0_i32_0 = arith.constant 0 : i32
    return %arg0, %c0_i32 : i32, i32
  }
  func.func @transform_1(%arg0: i32) -> (i32, i32) {
    %c0_i32 = arith.constant 0 : i32
    %c0_i32_0 = arith.constant 0 : i32
    return %arg0, %c0_i32 : i32, i32
  }
  func.func @transform_2(%arg0: i32) -> (i32, i32) {
    %c0_i32 = arith.constant 0 : i32
    %c0_i32_0 = arith.constant 0 : i32
    %c0_i32_1 = arith.constant 0 : i32
    return %c0_i32, %c0_i32_0 : i32, i32
  }
}

</mosaic_0001>

<llo_original>
// kernel: tpu_custom_call.1
$region0: #{tpu_custom_call.1}
  #allocation0 [shape = 'u32[]', space=smem, size = 0x4, offset = 0x4, fixed_abs, tag = 'smem constant byte address 0x4 - core index']
  #allocation1 [shape = 'u32[144,128]{1,0:T(1,128)}', space=vmem, size = 0x12000, scoped, tag = 'internal scratch']
  #allocation2 [shape = 'f32[16,1]{1,0:T(8,128)}', space=vmem, size = 0x2000, scoped, tag = 'scratch operand']
  %s0 = inlined_call_operand.vmem [shape: f32[16,32], index: 0, kind: input, shape index: {}]
  %s1 = inlined_call_operand.vmem [shape: s32[16,1], index: 1, kind: input, shape index: {}]
  %s2 = inlined_call_operand.hbm [shape: f32[8,128], index: 2, kind: output, shape index: {}]
  %s3 = sld [smem:[#allocation0]]
  $region26: #{tpu_custom_call.1} parent=0
    _
  %s5 = ssub.s32 1, %s3
  %s6 = scalar_select 0, %s5, %s3
  $region1: #{tpu_custom_call.1} parent=0
    #allocation3 [shape = 'u8[4096]{0}', space=vmem, size = 0x1000, scoped, tag = 'output window, operand 0, single buffered']
    #allocation4 [shape = 's32[1]{0}', space=sflag, size = 0x4, scoped, tag = 'scoped memory for tpu_custom_call.1']
    %7 = vsyncpa [#allocation4], 0
    // Predicated region
    $region2: #{tpu_custom_call.1} parent=1 // pred_check
      _
    $region3: #{tpu_custom_call.1} parent=1 // pred_check_branch
      %9 = sbr.rel (0) target = $region5
    $region4: #{tpu_custom_call.1} parent=1 // pred_region
      _
    $region5: #{tpu_custom_call.1} parent=1 // pred_fallthru
      _
    // Predicated region
    $region6: #{tpu_custom_call.1} parent=1 // pred_check
      _
    $region7: #{tpu_custom_call.1} parent=1 // pred_check_branch
      %11 = sbr.rel (0) target = $region9
    $region8: #{tpu_custom_call.1} parent=1 // pred_region
      _
    $region9: #{tpu_custom_call.1} parent=1 // pred_fallthru
      _
    %p12 = scmp.eq.s32.totalorder 0, 0
    // Predicated region
    $region10: #{tpu_custom_call.1} parent=1 // pred_check
      %p13 = pneg %p12
    $region11: #{tpu_custom_call.1} parent=1 // pred_check_branch
      %15 = sbr.rel (%p13) target = $region13
    $region12: #{tpu_custom_call.1} parent=1 // pred_region
      %vm16 = vcmask 7168
      %17 = vst.msk [vmem:[#allocation2] sm:$0xff] %vm16, 0.0
      %18 = vst.msk [vmem:[#allocation2 + $0x8] sm:$0xff] %vm16, 0.0
    $region13: #{tpu_custom_call.1} parent=1 // pred_fallthru
      _
    %v19 = vld [vmem:[%s0] sm:$0xff]
    %v20 = vld [vmem:[%s0 + $0x8] sm:$0xff]
    %v21 = vld [vmem:[%s1] sm:$0xff]
    %v22 = vld [vmem:[%s1 + $0x8] sm:$0xff]
    %s23 = smul.u32 0, 16
    %v24 = vlaneseq
    %v25 = vshrl.u32 %v24, 7
    %v26 = vadd.s32 %v25, 8
    %v27 = vstv %s23
    %v28 = vadd.s32 %v27, %v25
    %v29 = vadd.s32 %v27, %v26
    %vm30 = vcmp.lt.s32.totalorder %v28, 16
    %vm31 = vcmp.lt.s32.totalorder %v29, 16
    %vm32 = vcmp.ne.s32.totalorder %v21, 0
    %vm33 = vcmp.ne.s32.totalorder %v22, 0
    %vm34 = vmand %vm30, %vm32
    %vm35 = vmand %vm31, %vm33
    %v36 = vlaneseq
    %v37 = vand.u32 %v36, 127
    %38 = vset.pattern.permute.xlu0 0
    %39 = vperm.xlu0 %38, %v21
    %v40 = vpop.permute.xlu0 %39
    %41 = vset.pattern.permute.xlu0 0
    %42 = vperm.xlu0 %41, %v22
    %v43 = vpop.permute.xlu0 %42
    %vm44 = vcmp.eq.s32.totalorder %v37, %v40
    %vm45 = vcmp.eq.s32.totalorder %v37, %v43
    %v46 = vsel %vm34, 1, 0
    %v47 = vsel %vm35, 1, 0
    %48 = vset.pattern.permute.xlu0 0
    %49 = vperm.xlu0 %48, %v46
    %v50 = vpop.permute.xlu0 %49
    %51 = vset.pattern.permute.xlu0 0
    %52 = vperm.xlu0 %51, %v47
    %v53 = vpop.permute.xlu0 %52
    %vm54 = vcmp.eq.s32.totalorder %v50, 1
    %vm55 = vcmp.eq.s32.totalorder %v53, 1
    %vm56 = vmand %vm44, %vm54
    %vm57 = vmand %vm45, %vm55
    %v58 = vsub.f32 0.0, %v19
    %v59 = vsub.f32 0.0, %v20
    %v60 = vsel %vm56, %v58, 0.0
    %v61 = vsel %vm57, %v59, 0.0
    %v62 = vld [vmem:[#allocation2] sm:$0xff]
    %v63 = vld [vmem:[#allocation2 + $0x8] sm:$0xff]
    %vm64 = vcmask 261120
    %v65 = vsel %vm64, %v60, 0.0
    %66 = vadd.xlane.f32.xlu0 %v65
    %v67 = vpop.xlane.xlu0 %66
    %v68 = vsel %vm64, %v61, 0.0
    %69 = vadd.xlane.f32.xlu0 %v68
    %v70 = vpop.xlane.xlu0 %69
    %v71 = vadd.f32 %v62, %v67
    %v72 = vadd.f32 %v63, %v70
    %vm73 = vcmask 7168
    %74 = vst.msk [vmem:[#allocation2] sm:$0xff] %vm73, %v71
    %75 = vst.msk [vmem:[#allocation2 + $0x8] sm:$0xff] %vm73, %v72
    // Predicated region
    $region14: #{tpu_custom_call.1} parent=1 // pred_check
      %p76 = pneg %p12
    $region15: #{tpu_custom_call.1} parent=1 // pred_check_branch
      %78 = sbr.rel (%p76) target = $region17
    $region16: #{tpu_custom_call.1} parent=1 // pred_region
      %v79 = vld [vmem:[#allocation2] sm:$0xff]
      %v80 = vld [vmem:[#allocation2 + $0x8] sm:$0xff]
      %v81 = vsel %vm73, %v79, 0.0
      %v82 = vsel %vm73, %v80, 0.0
      %v83 = vadd.f32 %v81, %v82
      %84 = vadd.xlane.f32.xlu0 %v83
      %v85 = vpop.xlane.xlu0 %84
      %v86 = vrot.slane %v85, 4
      %v87 = vadd.f32 %v85, %v86
      %v88 = vrot.slane %v87, 2
      %v89 = vadd.f32 %v87, %v88
      %v90 = vrot.slane %v89, 1
      %v91 = vadd.f32 %v89, %v90
      %s92 = vtos %v91
      %v93 = vstv %s92
      %94 = vst [vmem:[#allocation3] sm:$0xff] %v93
    $region17: #{tpu_custom_call.1} parent=1 // pred_fallthru
      _
    // Predicated region
    $region18: #{tpu_custom_call.1} parent=1 // pred_check
      _
    $region19: #{tpu_custom_call.1} parent=1 // pred_check_branch
      %96 = sbr.rel (0) target = $region21
    $region20: #{tpu_custom_call.1} parent=1 // pred_region
      %s98 = ssub.s32 128, 128
      %99 = vsyncadd [#allocation4], %s98
      %s101 = sshll.u32 [#allocation3], 4
      %s102 = int_to_ptr.vmem [resolvable:$true] %s101
      %104 = dma.vmem_to_hbm [thread:$0]  %s102, 128, %s2, [#allocation4]
    $region21: #{tpu_custom_call.1} parent=1 // pred_fallthru
      _
    // Predicated region
    $region22: #{tpu_custom_call.1} parent=1 // pred_check
      _
    $region23: #{tpu_custom_call.1} parent=1 // pred_check_branch
      %106 = sbr.rel (0) target = $region25
    $region24: #{tpu_custom_call.1} parent=1 // pred_region
      %107 = dma.done [#allocation4], 128
    $region25: #{tpu_custom_call.1} parent=1 // pred_fallthru
      _
    %108 = vsyncpa [#allocation4], 1

</llo_original>
